<compile_context>
chip_gen: v7x
topology: tpu7x:2x2x1
jax: 0.10.0
libtpu: 0.0.40
codegen_flags: <defaults>
</compile_context>

<pallas_src>
import math

import jax
import jax.numpy as jnp
from jax.experimental import pallas as pl
from jax.experimental.pallas import tpu as pltpu


def _linear_packed_kernel(x_ref, w_ref, b_ref, o_ref):
    # x_ref: (TILE, P*F) packed rows
    # w_ref: (P*F, P*N)  block-diagonal W^T (zero rows for the F-K unused feats)
    # b_ref: (1, P*N)    bias replicated per packed slot, f32
    # o_ref: (TILE, P*N)
    acc = jnp.dot(x_ref[...], w_ref[...], preferred_element_type=jnp.float32)
    o_ref[...] = (acc + b_ref[...]).astype(o_ref.dtype)


def linear_embedding_forward(tk_codes, weight, bias, token_dim, *, tile_rows=1024):
    """Pallas TPU forward for LinearEmbedding.

    tk_codes: (..., F) with F >= token_dim (module slices the last dim).
    weight:   (n_embd, token_dim)   -- PyTorch nn.Linear layout.
    bias:     (n_embd,)
    returns:  (..., n_embd), same dtype as tk_codes.
    """
    n_embd, k = int(weight.shape[0]), int(weight.shape[1])
    assert k == token_dim, "weight shape must be (n_embd, token_dim)"
    lead_shape = tk_codes.shape[:-1]
    feat = int(tk_codes.shape[-1])
    assert feat >= token_dim
    m = int(math.prod(lead_shape)) if lead_shape else 1

    compute_dtype = tk_codes.dtype

    # Row-packing factor: put `pack` logical rows in one 128-lane output row so
    # the store is lane-dense.  Falls back to 1 if M isn't divisible or n_embd
    # is already lane-wide.
    pack = 1
    for cand in (8, 4, 2):
        if cand * n_embd <= 128 and m % cand == 0:
            pack = cand
            break

    mr = m // pack            # packed row count
    kp = pack * feat          # packed contraction dim (includes unused features)
    np_ = pack * n_embd       # packed output lane width

    # Free, contiguous reshape of the raw input -- no slice, no extra HBM pass.
    x_packed = tk_codes.reshape(mr, kp)

    # Block-diagonal weight: W^T per packed slot; rows for the F - token_dim
    # unused trailing features stay zero (this folds the [..., :token_dim]
    # slice into the matmul).  Tiny, built once.
    w_t = weight.T.astype(compute_dtype)                      # (K, N)
    wb = jnp.zeros((kp, np_), compute_dtype)
    for p in range(pack):
        wb = wb.at[p * feat:p * feat + token_dim,
                   p * n_embd:(p + 1) * n_embd].set(w_t)

    # Bias replicated per packed slot; kept f32 so it adds to the f32 accumulator.
    b_packed = jnp.tile(bias.astype(jnp.float32), pack).reshape(1, np_)

    # Row tiling: largest tile that comfortably fits scoped VMEM on all gens.
    tile = min(tile_rows, mr)
    if tile < mr:
        tile = max(8, (tile // 8) * 8)     # keep a multiple of 8 when not full-extent
    grid = (pl.cdiv(mr, tile),)

    itemsize = jnp.dtype(compute_dtype).itemsize
    cost = pl.CostEstimate(
        flops=2 * m * token_dim * n_embd,
        transcendentals=0,
        bytes_accessed=(x_packed.size * itemsize
                        + wb.size * itemsize
                        + b_packed.size * 4
                        + mr * np_ * itemsize),
    )

    out = pl.pallas_call(
        _linear_packed_kernel,
        out_shape=jax.ShapeDtypeStruct((mr, np_), compute_dtype),
        grid=grid,
        in_specs=[
            pl.BlockSpec((tile, kp), lambda i: (i, 0)),   # streamed row tiles
            pl.BlockSpec((kp, np_), lambda i: (0, 0)),    # resident weight
            pl.BlockSpec((1, np_), lambda i: (0, 0)),     # resident bias
        ],
        out_specs=pl.BlockSpec((tile, np_), lambda i: (i, 0)),
        compiler_params=pltpu.CompilerParams(
            dimension_semantics=("parallel",)),
        cost_estimate=cost,
    )(x_packed, wb, b_packed)

    # Free reshapes back: (M/P, P*N) -> (M, N) -> (*lead, N).
    return out.reshape(*lead_shape, n_embd)


if __name__ == "__main__":
    # Token config: dim=4 continuous token, embedded into n_embd=32.
    token_dim = 4
    n_embd = 32
    batch, seq = 2, 8
    feat = 6  # tk_codes carries extra trailing features; module slices [..., :token_dim]

    key = jax.random.PRNGKey(0)
    k_x, k_w, k_b = jax.random.split(key, 3)

    # Deterministic nn.Linear-style init: U(-1/sqrt(fan_in), 1/sqrt(fan_in)).
    bound = 1.0 / math.sqrt(token_dim)
    weight = jax.random.uniform(k_w, (n_embd, token_dim), jnp.float32, -bound, bound)
    bias = jax.random.uniform(k_b, (n_embd,), jnp.float32, -bound, bound)
    tk_codes = jax.random.normal(k_x, (batch, seq, feat), jnp.float32)

    fwd = jax.jit(linear_embedding_forward,
                  static_argnames=("token_dim", "tile_rows"))

    out = jax.block_until_ready(fwd(tk_codes, weight, bias, token_dim=token_dim))
    ref = tk_codes[..., :token_dim] @ weight.T + bias
    assert out.shape == (batch, seq, n_embd)
    assert out.dtype == tk_codes.dtype
    assert jnp.allclose(out, ref, atol=1e-5, rtol=1e-5)

    # Also exercise the unpacked fallback (M not divisible by the pack factor,
    # trailing feature dim exactly == token_dim).
    tk2 = jax.random.normal(k_x, (3, 5, token_dim), jnp.float32)
    out2 = jax.block_until_ready(fwd(tk2, weight, bias, token_dim=token_dim))
    ref2 = tk2 @ weight.T + bias
    assert jnp.allclose(out2, ref2, atol=1e-5, rtol=1e-5)

    print("KERNEL_OK")
</pallas_src>

<mosaic_0001>
module attributes {stable_mosaic.version = 11 : i64} {
  func.func @_linear_packed_kernel(%arg0: i32, %arg1: memref<4x24xf32, #tpu.memory_space<vmem>>, %arg2: memref<24x128xf32, #tpu.memory_space<vmem>>, %arg3: memref<1x128xf32, #tpu.memory_space<vmem>>, %arg4: memref<4x128xf32, #tpu.memory_space<vmem>>) attributes {dimension_semantics = [#tpu.dimension_semantics<parallel>], iteration_bounds = array<i64: 1>, scalar_prefetch = 0 : i64, scratch_operands = 0 : i64, tpu.core_type = #tpu.core_type<tc>, window_params = [{transform_indices = @transform_0, window_bounds = array<i64: 4, 24>}, {pipeline_mode = #tpu.pipeline_mode<synchronous>, transform_indices = @transform_1, window_bounds = array<i64: 24, 128>}, {pipeline_mode = #tpu.pipeline_mode<synchronous>, transform_indices = @transform_2, window_bounds = array<i64: 1, 128>}, {transform_indices = @transform_3, window_bounds = array<i64: 4, 128>}]} {
    %c0 = arith.constant 0 : index
    %c0_0 = arith.constant 0 : index
    %0 = vector.load %arg1[%c0, %c0_0] : memref<4x24xf32, #tpu.memory_space<vmem>>, vector<4x24xf32>
    %c0_1 = arith.constant 0 : index
    %c0_2 = arith.constant 0 : index
    %1 = vector.load %arg2[%c0_1, %c0_2] : memref<24x128xf32, #tpu.memory_space<vmem>>, vector<24x128xf32>
    %cst = arith.constant dense<0.000000e+00> : vector<4x128xf32>
    %2 = tpu.matmul %0, %1, %cst {dimension_numbers = #tpu.dot_dimension_numbers<[1], [0], [0], [1], [0, 0, 1, 1], [], []>} : vector<4x24xf32>, vector<24x128xf32>, vector<4x128xf32> -> vector<4x128xf32>
    %c0_3 = arith.constant 0 : index
    %c0_4 = arith.constant 0 : index
    %3 = vector.load %arg3[%c0_3, %c0_4] : memref<1x128xf32, #tpu.memory_space<vmem>>, vector<1x128xf32>
    %4 = vector.broadcast %3 : vector<1x128xf32> to vector<4x128xf32>
    %5 = arith.addf %2, %4 : vector<4x128xf32>
    %c0_5 = arith.constant 0 : index
    %c0_6 = arith.constant 0 : index
    %6 = vector.load %arg4[%c0_5, %c0_6] : memref<4x128xf32, #tpu.memory_space<vmem>>, vector<4x128xf32>
    tpu.vector_store %arg4[%c0_5, %c0_6], %5 {strides = array<i32>} : memref<4x128xf32, #tpu.memory_space<vmem>>, vector<4x128xf32>,
    return
  }
  func.func @transform_0(%arg0: i32) -> (i32, i32) {
    %c0_i32 = arith.constant 0 : i32
    %c0_i32_0 = arith.constant 0 : i32
    return %arg0, %c0_i32 : i32, i32
  }
  func.func @transform_1(%arg0: i32) -> (i32, i32) {
    %c0_i32 = arith.constant 0 : i32
    %c0_i32_0 = arith.constant 0 : i32
    %c0_i32_1 = arith.constant 0 : i32
    return %c0_i32, %c0_i32_0 : i32, i32
  }
  func.func @transform_2(%arg0: i32) -> (i32, i32) {
    %c0_i32 = arith.constant 0 : i32
    %c0_i32_0 = arith.constant 0 : i32
    %c0_i32_1 = arith.constant 0 : i32
    return %c0_i32, %c0_i32_0 : i32, i32
  }
  func.func @transform_3(%arg0: i32) -> (i32, i32) {
    %c0_i32 = arith.constant 0 : i32
    %c0_i32_0 = arith.constant 0 : i32
    return %arg0, %c0_i32 : i32, i32
  }
}

</mosaic_0001>

<llo_original>
// kernel: tile.8
$region0: #{tile.8}
  #allocation0 [shape = 's32[1]{0}', space=sflag, size = 0x4, scoped, tag = 'scoped memory for tile.8']
  %s0 = inlined_call_operand.vmem [shape: f32[32], index: 0, kind: input, shape index: {}]
  %s1 = inlined_call_operand.vmem [shape: f32[4,32], index: 1, kind: output, shape index: {}]
  // Predicated region
  $region2: #{tile.8} parent=0 // pred_check
    _
  $region3: #{tile.8} parent=0 // pred_check_branch
    %3 = sbr.rel (0) target = $region5
  $region4: #{tile.8} parent=0 // pred_region
    _
  $region5: #{tile.8} parent=0 // pred_fallthru
    _
  %v4 = vld [vmem:[%s0] ss:$0 sm:$0xff]
  %5 = vst [vmem:[%s1] sm:$0xf] %v4

// kernel: tile.9
$region0: #{tile.9}
  %s0 = inlined_call_operand.vmem [shape: f32[4,32], index: 0, kind: input, shape index: {}]
  %s1 = inlined_call_operand.vmem [shape: f32[1,128], index: 1, kind: output, shape index: {}]
  $region1: #{tile.9} parent=0
    #allocation0 [shape = 'u8[4096]{0}', space=vmem, size = 0x1000, scoped, tag = 'scoped mem for output reshape']
    #allocation1 [shape = 'u8[4096]{0}', space=vmem, size = 0x1000, scoped, tag = 'scoped mem for input reshape']
    %s3 = sshllo.u32 0, 4
    %v4 = vld [vmem:[%s0] sm:%s3]
    %5 = vst [vmem:[#allocation1] sm:%s3] %v4
    %v6 = vld [vmem:[#allocation1] sm:$0x1]
    %vm7 = vcmask 261120
    %8 = vst.msk [vmem:[#allocation0] sm:$0x1] %vm7, %v6
    %s9 = scalar_lea.vmem [#allocation1], 3
    %v10 = vld [vmem:[%s9] sm:$0x1]
    %11 = vrot.lane.b32.xlu0 %v10, 96
    %v12 = vpop.permute.xlu0 %11
    %vm13 = vcmask 1048320
    %14 = vst.msk [vmem:[#allocation0] sm:$0x1] %vm13, %v12
    %s15 = scalar_lea.vmem [#allocation1], 2
    %v16 = vld [vmem:[%s15] sm:$0x1]
    %17 = vrot.lane.b32.xlu0 %v16, 64
    %v18 = vpop.permute.xlu0 %17
    %vm19 = vcmask 785920
    %20 = vst.msk [vmem:[#allocation0] sm:$0x1] %vm19, %v18
    %s21 = scalar_lea.vmem [#allocation1], 1
    %v22 = vld [vmem:[%s21] sm:$0x1]
    %23 = vrot.lane.b32.xlu0 %v22, 32
    %v24 = vpop.permute.xlu0 %23
    %vm25 = vcmask 523520
    %26 = vst.msk [vmem:[#allocation0] sm:$0x1] %vm25, %v24
    %s28 = sshllo.u32 0, 1
    %v30 = vld [vmem:[#allocation0] sm:%s28]
    %s31 = sshllo.u32 0, 1
    %32 = vst [vmem:[%s1] sm:%s31] %v30

// kernel: linear_embedding_forward.1
$region0: #{linear_embedding_forward.1}
  #allocation0 [shape = 'u32[]', space=smem, size = 0x4, offset = 0x4, fixed_abs, tag = 'smem constant byte address 0x4 - core index']
  #allocation1 [shape = 'u32[144,128]{1,0:T(1,128)}', space=vmem, size = 0x12000, scoped, tag = 'internal scratch']
  %s0 = inlined_call_operand.vmem [shape: f32[4,24], index: 0, kind: input, shape index: {}]
  %s1 = inlined_call_operand.vmem [shape: f32[24,128], index: 1, kind: input, shape index: {}]
  %s2 = inlined_call_operand.vmem [shape: f32[1,128], index: 2, kind: input, shape index: {}]
  %s3 = inlined_call_operand.vmem [shape: f32[4,128], index: 3, kind: output, shape index: {}]
  %s4 = sld [smem:[#allocation0]]
  $region22: #{linear_embedding_forward.1} parent=0
    _
  %s6 = ssub.s32 1, %s4
  %s7 = scalar_select 0, %s6, %s4
  // Predicated region
  $region2: #{linear_embedding_forward.1} parent=0 // pred_check
    _
  $region3: #{linear_embedding_forward.1} parent=0 // pred_check_branch
    %9 = sbr.rel (0) target = $region5
  $region4: #{linear_embedding_forward.1} parent=0 // pred_region
    _
  $region5: #{linear_embedding_forward.1} parent=0 // pred_fallthru
    _
  // Predicated region
  $region6: #{linear_embedding_forward.1} parent=0 // pred_check
    _
  $region7: #{linear_embedding_forward.1} parent=0 // pred_check_branch
    %11 = sbr.rel (0) target = $region9
  $region8: #{linear_embedding_forward.1} parent=0 // pred_region
    _
  $region9: #{linear_embedding_forward.1} parent=0 // pred_fallthru
    _
  // Predicated region
  $region10: #{linear_embedding_forward.1} parent=0 // pred_check
    _
  $region11: #{linear_embedding_forward.1} parent=0 // pred_check_branch
    %13 = sbr.rel (0) target = $region13
  $region12: #{linear_embedding_forward.1} parent=0 // pred_region
    _
  $region13: #{linear_embedding_forward.1} parent=0 // pred_fallthru
    _
  %v14 = vld [vmem:[%s0] sm:$0xf]
  %v15 = vld [vmem:[%s1] sm:$0xff]
  %v16 = vld [vmem:[%s1 + $0x8] sm:$0xff]
  %v17 = vld [vmem:[%s1 + $0x10] sm:$0xff]
  %v18 = vld [vmem:[%s2] sm:$0x1]
  %v20 = vlaneseq
  %v21 = vshrl.u32 %v20, 7
  %v22 = vsub.s32 0, %v21
  %v23 = vrot.slane %v18, %v22
  %vm25 = vcmask 195584
  %v27 = vsel %vm25, %v14, 0
  %29 = vmatprep.subr.mxu0 0.0
  %30 = vmatpush1.msra.mxu0 %v15
  %31 = vmatprep.subr.mxu0 0.0
  %32 = vmatpush1.msra.mxu0 %v16
  %33 = vmatprep.subr.mxu0 0.0
  %34 = vmatpush1.msra.mxu0 %v17
  %35 = vmatprep.subr.mxu0 0.0
  %36 = vmatpush1.msra.mxu0 0.0
  %37 = vmatprep.subr.mxu0 0.0
  %38 = vmatpush1.msra.mxu0 0.0
  %39 = vmatprep.subr.mxu0 0.0
  %40 = vmatpush1.msra.mxu0 0.0
  %41 = vmatprep.subr.mxu0 0.0
  %42 = vmatpush1.msra.mxu0 0.0
  %43 = vmatprep.subr.mxu0 0.0
  %44 = vmatpush1.msra.mxu0 0.0
  %45 = vmatprep.subr.mxu0 0.0
  %46 = vmatpush1.msra.mxu0 0.0
  %47 = vmatprep.subr.mxu0 0.0
  %48 = vmatpush1.msra.mxu0 0.0
  %49 = vmatprep.subr.mxu0 0.0
  %50 = vmatpush1.msra.mxu0 0.0
  %51 = vmatprep.subr.mxu0 0.0
  %52 = vmatpush1.msra.mxu0 0.0
  %53 = vmatprep.subr.mxu0 0.0
  %54 = vmatpush1.msra.mxu0 0.0
  %55 = vmatprep.subr.mxu0 0.0
  %56 = vmatpush1.msra.mxu0 0.0
  %57 = vmatprep.subr.mxu0 0.0
  %58 = vmatpush1.msra.mxu0 0.0
  %59 = vmatprep.subr.mxu0 0.0
  %60 = vmatpush1.msra.mxu0 0.0
  %61 = vmatprep.subr.mxu0 0.0
  %62 = vmatpush1.msra.mxu0 0.0
  %63 = vmatprep.subr.mxu0 0.0
  %64 = vmatpush1.msra.mxu0 0.0
  %65 = vmatprep.subr.mxu0 0.0
  %66 = vmatpush1.msra.mxu0 0.0
  %67 = vmatprep.subr.mxu0 0.0
  %68 = vmatpush1.msra.mxu0 0.0
  %69 = vmatprep.subr.mxu0 0.0
  %70 = vmatpush1.msra.mxu0 0.0
  %71 = vmatprep.subr.mxu0 0.0
  %72 = vmatpush1.msra.mxu0 0.0
  %73 = vmatprep.subr.mxu0 0.0
  %74 = vmatpush1.msra.mxu0 0.0
  %75 = vmatprep.subr.mxu0 0.0
  %76 = vmatpush1.msra.mxu0 0.0
  %77 = vmatprep.subr.mxu0 0.0
  %78 = vmatpush1.msra.mxu0 0.0
  %79 = vmatprep.subr.mxu0 0.0
  %80 = vmatpush1.msra.mxu0 0.0
  %81 = vmatprep.subr.mxu0 0.0
  %82 = vmatpush1.msra.mxu0 0.0
  %83 = vmatprep.subr.mxu0 0.0
  %84 = vmatpush1.msra.mxu0 0.0
  %85 = vmatprep.subr.mxu0 0.0
  %86 = vmatpush1.msra.mxu0 0.0
  %87 = vmatprep.subr.mxu0 0.0
  %88 = vmatpush1.msra.mxu0 0.0
  %89 = vmatprep.subr.mxu0 0.0
  %90 = vmatpush1.msra.mxu0 0.0
  %91 = vmatprep.subr.mxu0 0.0
  %92 = vmatpush1.msra.mxu0 0.0
  %93 = vmatprep.mubr.f32.mxu0 0.0
  %94 = vmatmul.mubr.f32.gmra.mrb[0].mxu0 %v27
  %v95 = vpop.f32.mrb[0].mxu0
  %v96 = vadd.f32 %v23, %v95
  %v97 = vpop.f32.mrb[0].mxu0
  %98 = vdwg.mxu0
  %99 = vst [vmem:[%s3] sm:$0xf] %v96
  // Predicated region
  $region14: #{linear_embedding_forward.1} parent=0 // pred_check
    _
  $region15: #{linear_embedding_forward.1} parent=0 // pred_check_branch
    %101 = sbr.rel (0) target = $region17
  $region16: #{linear_embedding_forward.1} parent=0 // pred_region
    _
  $region17: #{linear_embedding_forward.1} parent=0 // pred_fallthru
    _
  // Predicated region
  $region18: #{linear_embedding_forward.1} parent=0 // pred_check
    _
  $region19: #{linear_embedding_forward.1} parent=0 // pred_check_branch
    %103 = sbr.rel (0) target = $region21
  $region20: #{linear_embedding_forward.1} parent=0 // pred_region
    _
  $region21: #{linear_embedding_forward.1} parent=0 // pred_fallthru
    _

</llo_original>
